<compile_context>
chip_gen: v5e
topology: v5e:2x2
jax: 0.10.0
libtpu: 0.0.40
codegen_flags: <defaults>
</compile_context>

<pallas_src>
import jax
import jax.numpy as jnp
from jax.experimental import pallas as pl
from jax.experimental.pallas import tpu as pltpu

_BN_EPS = 1e-5  # PyTorch BatchNorm1d default


def _pick_row_tile(n, target):
    """Largest row tile <= target that evenly divides n (multiple of 8 if tiled)."""
    if n <= target:
        return n
    t = (target // 8) * 8
    while t >= 8:
        if n % t == 0:
            return t
        t -= 8
    # TODO(synk): awkward N with no multiple-of-8 divisor falls back to a full-N
    # tile; for very large such N mask a short last tile instead (v7x has only
    # 64 MiB VMEM, 32 MiB default scoped).
    return n


def _make_fused_kernel(n_rows, d_in, d_out, eps):
    inv_n = 1.0 / float(n_rows)

    def kernel(x_ref, gamma_ref, beta_ref, w_ref, b_ref, o_ref,
               sum_sc, sumsq_sc, wf_sc, bf_sc):
        p = pl.program_id(0)          # phase: 0 = stats+fold, 1 = matmul+relu
        i = pl.program_id(1)          # row tile
        last = pl.num_programs(1) - 1

        @pl.when(jnp.logical_and(p == 0, i == 0))
        def _init():
            sum_sc[...] = jnp.zeros_like(sum_sc)
            sumsq_sc[...] = jnp.zeros_like(sumsq_sc)

        @pl.when(p == 0)
        def _accumulate():
            x = x_ref[...].astype(jnp.float32)
            sum_sc[...] += jnp.sum(x, axis=0, keepdims=True)
            sumsq_sc[...] += jnp.sum(x * x, axis=0, keepdims=True)

        @pl.when(jnp.logical_and(p == 0, i == last))
        def _finalize_fold():
            mean = sum_sc[...] * inv_n                                    # (1, D)
            var = jnp.maximum(sumsq_sc[...] * inv_n - mean * mean, 0.0)   # biased var
            scale = gamma_ref[...] * jax.lax.rsqrt(var + eps)             # (1, D)
            shift = beta_ref[...] - mean * scale                          # (1, D)
            w = w_ref[...].astype(jnp.float32)                            # (D, D_out)
            # W' = diag(scale) @ W, built via an iota mask (no cross-lane transpose).
            rows = jax.lax.broadcasted_iota(jnp.int32, (d_in, d_in), 0)
            cols = jax.lax.broadcasted_iota(jnp.int32, (d_in, d_in), 1)
            diag_scale = jnp.where(rows == cols,
                                   jnp.broadcast_to(scale, (d_in, d_in)), 0.0)
            wf_sc[...] = jnp.dot(diag_scale, w, preferred_element_type=jnp.float32)
            bf_sc[...] = (jnp.dot(shift, w, preferred_element_type=jnp.float32)
                          + b_ref[...])

        @pl.when(p == 1)
        def _compute():
            # Dropout: inference mode => identity.
            # TODO(synk): training-mode dropout (pltpu.prng_* mask + 1/(1-p) scale) not emitted.
            x = x_ref[...].astype(jnp.float32)
            y = jnp.dot(x, wf_sc[...], preferred_element_type=jnp.float32)
            o_ref[...] = jnp.maximum(y + bf_sc[...], 0.0).astype(o_ref.dtype)

    return kernel


def downsampling_block(x, gamma, beta, w_t, b, *, row_tile=4096):
    """x: (N, D); gamma/beta: (D,); w_t: (D, D//2) (= PyTorch Linear weight.T); b: (D//2,)."""
    n, d = x.shape
    d_out = w_t.shape[1]

    tn = _pick_row_tile(n, row_tile)
    n_tiles = n // tn

    # Parameter prep: reshape/astype only (no padding). Hoist to load time in a real model.
    gamma2 = gamma.reshape(1, d).astype(jnp.float32)
    beta2 = beta.reshape(1, d).astype(jnp.float32)
    w2 = w_t.astype(jnp.float32)
    b2 = b.reshape(1, d_out).astype(jnp.float32)

    return pl.pallas_call(
        _make_fused_kernel(n, d, d_out, _BN_EPS),
        grid=(2, n_tiles),
        out_shape=jax.ShapeDtypeStruct((n, d_out), x.dtype),
        in_specs=[
            pl.BlockSpec((tn, d), lambda p, i: (i, 0)),       # x row tile
            pl.BlockSpec((1, d), lambda p, i: (0, 0)),        # gamma (resident)
            pl.BlockSpec((1, d), lambda p, i: (0, 0)),        # beta  (resident)
            pl.BlockSpec((d, d_out), lambda p, i: (0, 0)),    # W.T   (resident)
            pl.BlockSpec((1, d_out), lambda p, i: (0, 0)),    # bias  (resident)
        ],
        # Pin the output block to 0 during phase 0 (it is never written there),
        # so the only HBM writebacks are the real phase-1 stores.
        out_specs=pl.BlockSpec((tn, d_out), lambda p, i: (i * p, 0)),
        scratch_shapes=[
            pltpu.VMEM((1, d), jnp.float32),       # running sum
            pltpu.VMEM((1, d), jnp.float32),       # running sum of squares
            pltpu.VMEM((d, d_out), jnp.float32),   # folded W'
            pltpu.VMEM((1, d_out), jnp.float32),   # folded b'
        ],
        # Both axes sequential: phase 1 depends on phase-0 scratch, and the
        # full-batch reduction needs every row tile on one core.
        compiler_params=pltpu.CompilerParams(
            dimension_semantics=("arbitrary", "arbitrary")),
    )(x, gamma2, beta2, w2, b2)


def reference(x, gamma, beta, w_t, b):
    mean = jnp.mean(x, axis=0, keepdims=True)
    var = jnp.mean((x - mean) ** 2, axis=0, keepdims=True)   # biased variance
    h = (x - mean) * jax.lax.rsqrt(var + _BN_EPS) * gamma + beta
    return jnp.maximum(h @ w_t + b, 0.0)


if __name__ == "__main__":
    key = jax.random.PRNGKey(0)
    k_x, k_g, k_be, k_w, k_b = jax.random.split(key, 5)

    N, D = 64, 32            # batch=64, input_dim=32 -> output_dim=16
    D_OUT = D // 2

    x = jax.random.normal(k_x, (N, D), dtype=jnp.float32)
    # Deterministic synthetic parameters (shapes match nn.BatchNorm1d / nn.Linear).
    gamma = 1.0 + 0.1 * jax.random.normal(k_g, (D,), dtype=jnp.float32)
    beta = 0.1 * jax.random.normal(k_be, (D,), dtype=jnp.float32)
    # PyTorch Linear weight is (D_OUT, D); pre-transposed to (D, D_OUT).
    w_t = (jax.random.normal(k_w, (D_OUT, D), dtype=jnp.float32) / jnp.sqrt(D)).T
    b = 0.05 * jax.random.normal(k_b, (D_OUT,), dtype=jnp.float32)

    # row_tile=32 -> grid (2 phases, 2 row tiles): exercises both the streamed
    # stats accumulation + fold and the tiled phase-1 writeback path.
    out = downsampling_block(x, gamma, beta, w_t, b, row_tile=32)
    out = jax.block_until_ready(out)

    ref = reference(x, gamma, beta, w_t, b)
    assert out.shape == (N, D_OUT)
    assert jnp.allclose(out, ref, atol=1e-4, rtol=1e-4), "mismatch vs reference"

    print("KERNEL_OK")
</pallas_src>

<mosaic_0001>
module attributes {stable_mosaic.version = 11 : i64} {
  func.func @kernel(%arg0: i32, %arg1: i32, %arg2: memref<32x32xf32, #tpu.memory_space<vmem>>, %arg3: memref<1x32xf32, #tpu.memory_space<vmem>>, %arg4: memref<1x32xf32, #tpu.memory_space<vmem>>, %arg5: memref<32x16xf32, #tpu.memory_space<vmem>>, %arg6: memref<1x16xf32, #tpu.memory_space<vmem>>, %arg7: memref<32x16xf32, #tpu.memory_space<vmem>>, %arg8: memref<1x32xf32, #tpu.memory_space<vmem>>, %arg9: memref<1x32xf32, #tpu.memory_space<vmem>>, %arg10: memref<32x16xf32, #tpu.memory_space<vmem>>, %arg11: memref<1x16xf32, #tpu.memory_space<vmem>>) attributes {dimension_semantics = [#tpu.dimension_semantics<arbitrary>, #tpu.dimension_semantics<arbitrary>], iteration_bounds = array<i64: 2, 2>, scalar_prefetch = 0 : i64, scratch_operands = 4 : i64, tpu.core_type = #tpu.core_type<tc>, window_params = [{transform_indices = @transform_0, window_bounds = array<i64: 32, 32>}, {pipeline_mode = #tpu.pipeline_mode<synchronous>, transform_indices = @transform_1, window_bounds = array<i64: 1, 32>}, {pipeline_mode = #tpu.pipeline_mode<synchronous>, transform_indices = @transform_2, window_bounds = array<i64: 1, 32>}, {pipeline_mode = #tpu.pipeline_mode<synchronous>, transform_indices = @transform_3, window_bounds = array<i64: 32, 16>}, {pipeline_mode = #tpu.pipeline_mode<synchronous>, transform_indices = @transform_4, window_bounds = array<i64: 1, 16>}, {transform_indices = @transform_5, window_bounds = array<i64: 32, 16>}]} {
    %c0_i32 = arith.constant 0 : i32
    %0 = arith.cmpi eq, %arg0, %c0_i32 : i32
    %c0_i32_0 = arith.constant 0 : i32
    %1 = arith.cmpi eq, %arg1, %c0_i32_0 : i32
    %2 = arith.andi %0, %1 : i1
    %3 = arith.extui %2 : i1 to i32
    %c0_i32_1 = arith.constant 0 : i32
    %4 = arith.cmpi ne, %3, %c0_i32_1 : i32
    scf.if %4 {
      %cst = arith.constant 0.000000e+00 : f32
      %16 = vector.broadcast %cst : f32 to vector<1x32xf32>
      %c0 = arith.constant 0 : index
      %c0_8 = arith.constant 0 : index
      %17 = vector.load %arg8[%c0, %c0_8] : memref<1x32xf32, #tpu.memory_space<vmem>>, vector<1x32xf32>
      tpu.vector_store %arg8[%c0, %c0_8], %16 {strides = array<i32>} : memref<1x32xf32, #tpu.memory_space<vmem>>, vector<1x32xf32>,
      %cst_9 = arith.constant 0.000000e+00 : f32
      %18 = vector.broadcast %cst_9 : f32 to vector<1x32xf32>
      %c0_10 = arith.constant 0 : index
      %c0_11 = arith.constant 0 : index
      %19 = vector.load %arg9[%c0_10, %c0_11] : memref<1x32xf32, #tpu.memory_space<vmem>>, vector<1x32xf32>
      tpu.vector_store %arg9[%c0_10, %c0_11], %18 {strides = array<i32>} : memref<1x32xf32, #tpu.memory_space<vmem>>, vector<1x32xf32>,
    } else {
    }
    %c0_i32_2 = arith.constant 0 : i32
    %5 = arith.cmpi eq, %arg0, %c0_i32_2 : i32
    %6 = arith.extui %5 : i1 to i32
    %c0_i32_3 = arith.constant 0 : i32
    %7 = arith.cmpi ne, %6, %c0_i32_3 : i32
    scf.if %7 {
      %c0 = arith.constant 0 : index
      %c0_8 = arith.constant 0 : index
      %16 = vector.load %arg2[%c0, %c0_8] : memref<32x32xf32, #tpu.memory_space<vmem>>, vector<32x32xf32>
      %c0_9 = arith.constant 0 : index
      %c0_10 = arith.constant 0 : index
      %17 = vector.load %arg8[%c0_9, %c0_10] : memref<1x32xf32, #tpu.memory_space<vmem>>, vector<1x32xf32>
      %cst = arith.constant dense<0.000000e+00> : vector<32xf32>
      %18 = vector.multi_reduction <add>, %16, %cst [0] : vector<32x32xf32> to vector<32xf32>
      %19 = vector.shape_cast %18 : vector<32xf32> to vector<1x32xf32>
      %20 = arith.addf %17, %19 : vector<1x32xf32>
      %c0_11 = arith.constant 0 : index
      %c0_12 = arith.constant 0 : index
      %21 = vector.load %arg8[%c0_11, %c0_12] : memref<1x32xf32, #tpu.memory_space<vmem>>, vector<1x32xf32>
      tpu.vector_store %arg8[%c0_11, %c0_12], %20 {strides = array<i32>} : memref<1x32xf32, #tpu.memory_space<vmem>>, vector<1x32xf32>,
      %c0_13 = arith.constant 0 : index
      %c0_14 = arith.constant 0 : index
      %22 = vector.load %arg9[%c0_13, %c0_14] : memref<1x32xf32, #tpu.memory_space<vmem>>, vector<1x32xf32>
      %23 = arith.mulf %16, %16 : vector<32x32xf32>
      %cst_15 = arith.constant dense<0.000000e+00> : vector<32xf32>
      %24 = vector.multi_reduction <add>, %23, %cst_15 [0] : vector<32x32xf32> to vector<32xf32>
      %25 = vector.shape_cast %24 : vector<32xf32> to vector<1x32xf32>
      %26 = arith.addf %22, %25 : vector<1x32xf32>
      %c0_16 = arith.constant 0 : index
      %c0_17 = arith.constant 0 : index
      %27 = vector.load %arg9[%c0_16, %c0_17] : memref<1x32xf32, #tpu.memory_space<vmem>>, vector<1x32xf32>
      tpu.vector_store %arg9[%c0_16, %c0_17], %26 {strides = array<i32>} : memref<1x32xf32, #tpu.memory_space<vmem>>, vector<1x32xf32>,
    } else {
    }
    %c0_i32_4 = arith.constant 0 : i32
    %8 = arith.cmpi eq, %arg0, %c0_i32_4 : i32
    %c1_i32 = arith.constant 1 : i32
    %9 = arith.cmpi eq, %arg1, %c1_i32 : i32
    %10 = arith.andi %8, %9 : i1
    %11 = arith.extui %10 : i1 to i32
    %c0_i32_5 = arith.constant 0 : i32
    %12 = arith.cmpi ne, %11, %c0_i32_5 : i32
    scf.if %12 {
      %c0 = arith.constant 0 : index
      %c0_8 = arith.constant 0 : index
      %16 = vector.load %arg8[%c0, %c0_8] : memref<1x32xf32, #tpu.memory_space<vmem>>, vector<1x32xf32>
      %cst = arith.constant 1.562500e-02 : f32
      %17 = vector.broadcast %cst : f32 to vector<1x32xf32>
      %18 = arith.mulf %16, %17 : vector<1x32xf32>
      %c0_9 = arith.constant 0 : index
      %c0_10 = arith.constant 0 : index
      %19 = vector.load %arg9[%c0_9, %c0_10] : memref<1x32xf32, #tpu.memory_space<vmem>>, vector<1x32xf32>
      %cst_11 = arith.constant 1.562500e-02 : f32
      %20 = vector.broadcast %cst_11 : f32 to vector<1x32xf32>
      %21 = arith.mulf %19, %20 : vector<1x32xf32>
      %22 = arith.mulf %18, %18 : vector<1x32xf32>
      %23 = arith.subf %21, %22 : vector<1x32xf32>
      %cst_12 = arith.constant 0.000000e+00 : f32
      %24 = vector.broadcast %cst_12 : f32 to vector<1x32xf32>
      %25 = arith.maximumf %23, %24 : vector<1x32xf32>
      %c0_13 = arith.constant 0 : index
      %c0_14 = arith.constant 0 : index
      %26 = vector.load %arg3[%c0_13, %c0_14] : memref<1x32xf32, #tpu.memory_space<vmem>>, vector<1x32xf32>
      %cst_15 = arith.constant 9.99999974E-6 : f32
      %27 = vector.broadcast %cst_15 : f32 to vector<1x32xf32>
      %28 = arith.addf %25, %27 : vector<1x32xf32>
      %29 = math.rsqrt %28 : vector<1x32xf32>
      %30 = arith.mulf %26, %29 : vector<1x32xf32>
      %c0_16 = arith.constant 0 : index
      %c0_17 = arith.constant 0 : index
      %31 = vector.load %arg4[%c0_16, %c0_17] : memref<1x32xf32, #tpu.memory_space<vmem>>, vector<1x32xf32>
      %32 = arith.mulf %18, %30 : vector<1x32xf32>
      %33 = arith.subf %31, %32 : vector<1x32xf32>
      %c0_18 = arith.constant 0 : index
      %c0_19 = arith.constant 0 : index
      %34 = vector.load %arg5[%c0_18, %c0_19] : memref<32x16xf32, #tpu.memory_space<vmem>>, vector<32x16xf32>
      %35 = tpu.iota {dimensions = array<i32: 0>} : vector<32x32xi32>
      %36 = tpu.iota {dimensions = array<i32: 1>} : vector<32x32xi32>
      %37 = arith.cmpi eq, %35, %36 : vector<32x32xi32>
      %38 = vector.shape_cast %30 : vector<1x32xf32> to vector<1x32xf32>
      %39 = vector.broadcast %38 : vector<1x32xf32> to vector<32x32xf32>
      %cst_20 = arith.constant 0.000000e+00 : f32
      %40 = vector.broadcast %cst_20 : f32 to vector<32x32xf32>
      %41 = arith.select %37, %39, %40 : vector<32x32xi1>, vector<32x32xf32>
      %cst_21 = arith.constant dense<0.000000e+00> : vector<32x16xf32>
      %42 = tpu.matmul %41, %34, %cst_21 {dimension_numbers = #tpu.dot_dimension_numbers<[1], [0], [0], [1], [0, 0, 1, 1], [], []>} : vector<32x32xf32>, vector<32x16xf32>, vector<32x16xf32> -> vector<32x16xf32>
      %c0_22 = arith.constant 0 : index
      %c0_23 = arith.constant 0 : index
      %43 = vector.load %arg10[%c0_22, %c0_23] : memref<32x16xf32, #tpu.memory_space<vmem>>, vector<32x16xf32>
      tpu.vector_store %arg10[%c0_22, %c0_23], %42 {strides = array<i32>} : memref<32x16xf32, #tpu.memory_space<vmem>>, vector<32x16xf32>,
      %cst_24 = arith.constant dense<0.000000e+00> : vector<1x16xf32>
      %44 = tpu.matmul %33, %34, %cst_24 {dimension_numbers = #tpu.dot_dimension_numbers<[1], [0], [0], [1], [0, 0, 1, 1], [], []>} : vector<1x32xf32>, vector<32x16xf32>, vector<1x16xf32> -> vector<1x16xf32>
      %c0_25 = arith.constant 0 : index
      %c0_26 = arith.constant 0 : index
      %45 = vector.load %arg6[%c0_25, %c0_26] : memref<1x16xf32, #tpu.memory_space<vmem>>, vector<1x16xf32>
      %46 = arith.addf %44, %45 : vector<1x16xf32>
      %c0_27 = arith.constant 0 : index
      %c0_28 = arith.constant 0 : index
      %47 = vector.load %arg11[%c0_27, %c0_28] : memref<1x16xf32, #tpu.memory_space<vmem>>, vector<1x16xf32>
      tpu.vector_store %arg11[%c0_27, %c0_28], %46 {strides = array<i32>} : memref<1x16xf32, #tpu.memory_space<vmem>>, vector<1x16xf32>,
    } else {
    }
    %c1_i32_6 = arith.constant 1 : i32
    %13 = arith.cmpi eq, %arg0, %c1_i32_6 : i32
    %14 = arith.extui %13 : i1 to i32
    %c0_i32_7 = arith.constant 0 : i32
    %15 = arith.cmpi ne, %14, %c0_i32_7 : i32
    scf.if %15 {
      %c0 = arith.constant 0 : index
      %c0_8 = arith.constant 0 : index
      %16 = vector.load %arg2[%c0, %c0_8] : memref<32x32xf32, #tpu.memory_space<vmem>>, vector<32x32xf32>
      %c0_9 = arith.constant 0 : index
      %c0_10 = arith.constant 0 : index
      %17 = vector.load %arg10[%c0_9, %c0_10] : memref<32x16xf32, #tpu.memory_space<vmem>>, vector<32x16xf32>
      %cst = arith.constant dense<0.000000e+00> : vector<32x16xf32>
      %18 = tpu.matmul %16, %17, %cst {dimension_numbers = #tpu.dot_dimension_numbers<[1], [0], [0], [1], [0, 0, 1, 1], [], []>} : vector<32x32xf32>, vector<32x16xf32>, vector<32x16xf32> -> vector<32x16xf32>
      %c0_11 = arith.constant 0 : index
      %c0_12 = arith.constant 0 : index
      %19 = vector.load %arg11[%c0_11, %c0_12] : memref<1x16xf32, #tpu.memory_space<vmem>>, vector<1x16xf32>
      %20 = vector.broadcast %19 : vector<1x16xf32> to vector<32x16xf32>
      %21 = arith.addf %18, %20 : vector<32x16xf32>
      %cst_13 = arith.constant 0.000000e+00 : f32
      %22 = vector.broadcast %cst_13 : f32 to vector<32x16xf32>
      %23 = arith.maximumf %21, %22 : vector<32x16xf32>
      %c0_14 = arith.constant 0 : index
      %c0_15 = arith.constant 0 : index
      %24 = vector.load %arg7[%c0_14, %c0_15] : memref<32x16xf32, #tpu.memory_space<vmem>>, vector<32x16xf32>
      tpu.vector_store %arg7[%c0_14, %c0_15], %23 {strides = array<i32>} : memref<32x16xf32, #tpu.memory_space<vmem>>, vector<32x16xf32>,
    } else {
    }
    return
  }
  func.func @transform_0(%arg0: i32, %arg1: i32) -> (i32, i32) {
    %c0_i32 = arith.constant 0 : i32
    %c0_i32_0 = arith.constant 0 : i32
    return %arg1, %c0_i32 : i32, i32
  }
  func.func @transform_1(%arg0: i32, %arg1: i32) -> (i32, i32) {
    %c0_i32 = arith.constant 0 : i32
    %c0_i32_0 = arith.constant 0 : i32
    %c0_i32_1 = arith.constant 0 : i32
    return %c0_i32, %c0_i32_0 : i32, i32
  }
  func.func @transform_2(%arg0: i32, %arg1: i32) -> (i32, i32) {
    %c0_i32 = arith.constant 0 : i32
    %c0_i32_0 = arith.constant 0 : i32
    %c0_i32_1 = arith.constant 0 : i32
    return %c0_i32, %c0_i32_0 : i32, i32
  }
  func.func @transform_3(%arg0: i32, %arg1: i32) -> (i32, i32) {
    %c0_i32 = arith.constant 0 : i32
    %c0_i32_0 = arith.constant 0 : i32
    %c0_i32_1 = arith.constant 0 : i32
    return %c0_i32, %c0_i32_0 : i32, i32
  }
  func.func @transform_4(%arg0: i32, %arg1: i32) -> (i32, i32) {
    %c0_i32 = arith.constant 0 : i32
    %c0_i32_0 = arith.constant 0 : i32
    %c0_i32_1 = arith.constant 0 : i32
    return %c0_i32, %c0_i32_0 : i32, i32
  }
  func.func @transform_5(%arg0: i32, %arg1: i32) -> (i32, i32) {
    %0 = arith.muli %arg1, %arg0 : i32
    %c0_i32 = arith.constant 0 : i32
    %c0_i32_0 = arith.constant 0 : i32
    return %0, %c0_i32 : i32, i32
  }
}

</mosaic_0001>

<llo_original>
// kernel: tpu_custom_call.1
$region0: #{tpu_custom_call.1}
  #allocation0 [shape = 'u32[]', space=smem, size = 0x4, offset = 0x4, fixed_abs, tag = 'smem constant byte address 0x4 - core index']
  #allocation1 [shape = 'u32[72,128]{1,0:T(1,128)}', space=vmem, size = 0x9000, scoped, tag = 'internal scratch']
  #allocation2 [shape = 'f32[1,32]{1,0:T(1,128)}', space=vmem, size = 0x200, scoped, tag = 'scratch operand']
  #allocation3 [shape = 'f32[1,32]{1,0:T(1,128)}', space=vmem, size = 0x200, scoped, tag = 'scratch operand']
  #allocation4 [shape = 'f32[32,16]{1,0:T(8,128)}', space=vmem, size = 0x4000, scoped, tag = 'scratch operand']
  #allocation5 [shape = 'f32[1,16]{1,0:T(1,128)}', space=vmem, size = 0x200, scoped, tag = 'scratch operand']
  %s0 = inlined_call_operand.vmem [shape: f32[64,32], index: 0, kind: input, shape index: {}]
  %s1 = inlined_call_operand.vmem [shape: f32[1,32], index: 1, kind: input, shape index: {}]
  %s2 = inlined_call_operand.vmem [shape: f32[1,32], index: 2, kind: input, shape index: {}]
  %s3 = inlined_call_operand.vmem [shape: f32[32,16], index: 3, kind: input, shape index: {}]
  %s4 = inlined_call_operand.vmem [shape: f32[1,16], index: 4, kind: input, shape index: {}]
  %s5 = inlined_call_operand.vmem [shape: f32[64,16], index: 5, kind: output, shape index: {}]
  %s6 = sld [smem:[#allocation0]]
  $region69: #{tpu_custom_call.1} parent=0
    _
  %s8 = ssub.s32 1, %s6
  %s9 = scalar_select 0, %s8, %s6
  loop: start=0, step=1, limit=6
  $region2: #{tpu_custom_call.1} parent=0 // loop_pre_header
    _
  $region3: #{tpu_custom_call.1} parent=0 // loop_header
    %s11 = sphi 0, %s15
    %p12 = scmp.ge.s32.totalorder %s11, 6
    %s18 = sphi 0, %s30
    %s19 = sphi 0, %s26
    %s20 = sphi 0, %s18
    %s21 = sphi 0, %s19
    %s22 = sphi 0, %s20
    %s23 = sphi 0, %s21
    %s33 = sphi 0, %s35
    %s36 = sphi 0, %s33
    %s37 = sphi 0, %s36
    %s53 = sphi 0, %s37
    %s57 = sphi 0, %s57
    %s59 = sphi 0, %s57
    %s60 = sphi 0, %s59
    %s74 = sphi 0, %s60
    %s78 = sphi 0, %s78
    %s80 = sphi 0, %s78
    %s81 = sphi 0, %s80
    %s95 = sphi 0, %s81
    %s99 = sphi 0, %s99
    %s101 = sphi 0, %s99
    %s102 = sphi 0, %s101
    %s116 = sphi 0, %s102
    %s120 = sphi 0, %s120
    %s122 = sphi 0, %s120
    %s123 = sphi 0, %s122
    %s137 = sphi 0, %s123
    %s145 = sphi 0, %s147
    %s148 = sphi 0, %s145
    %s149 = sphi 0, %s148
    %s165 = sphi 0, %s149
  $region4: #{tpu_custom_call.1} parent=0 // loop_header_branch
    %14 = sbr.rel (%p12) target = $region8
  $region5: #{tpu_custom_call.1} parent=0 // loop_body
    %s16 = ssub.s32 %s11, 1
    %s17 = ssub.s32 %s11, 2
    %s24 = sadd.s32 1, %s19
    %p25 = scmp.ge.s32.totalorder %s24, 2
    %s26 = scalar_select %p25, 0, %s24
    %s27 = sadd.s32 1, %s18
    %s28 = scalar_select %p25, %s27, %s18
    %p29 = scmp.ge.s32.totalorder %s28, 2
    %s30 = scalar_select %p29, 0, %s28
    %s31 = ssub.s32 %s19, %s26
    %p32 = scmp.eq.s32.totalorder %s31, 0
    %s34 = sadd.s32 %s33, 1
    %s35 = scalar_select %p32, %s33, %s34
    %p38 = pneg %p32
    %p39 = scmp.eq.s32.totalorder %s11, 3
    %p40 = por %p38, %p39
    %p41 = scmp.ne.s32.totalorder %s33, %s36
    %p42 = scmp.eq.s32.totalorder %s11, 0
    %p43 = por %p41, %p42
    %p44 = scmp.ne.s32.totalorder %s33, %s36
    %p45 = scmp.eq.s32.totalorder %s16, 3
    %p46 = por %p44, %p45
    %p47 = scmp.ne.s32.totalorder %s36, %s37
    %p48 = scmp.eq.s32.totalorder %s16, 0
    %p49 = por %p47, %p48
    %p50 = scmp.ne.s32.totalorder %s36, %s37
    %p51 = scmp.eq.s32.totalorder %s17, 3
    %p52 = por %p50, %p51
    %p54 = scmp.ne.s32.totalorder %s37, %s53
    %p55 = scmp.eq.s32.totalorder %s17, 0
    %p56 = por %p54, %p55
    %s58 = sadd.s32 %s57, 1
    %p61 = scmp.eq.s32.totalorder %s11, 3
    %p62 = scmp.ne.s32.totalorder %s57, %s59
    %p63 = scmp.eq.s32.totalorder %s11, 0
    %p64 = por %p62, %p63
    %p65 = scmp.ne.s32.totalorder %s57, %s59
    %p66 = scmp.eq.s32.totalorder %s16, 3
    %p67 = por %p65, %p66
    %p68 = scmp.ne.s32.totalorder %s59, %s60
    %p69 = scmp.eq.s32.totalorder %s16, 0
    %p70 = por %p68, %p69
    %p71 = scmp.ne.s32.totalorder %s59, %s60
    %p72 = scmp.eq.s32.totalorder %s17, 3
    %p73 = por %p71, %p72
    %p75 = scmp.ne.s32.totalorder %s60, %s74
    %p76 = scmp.eq.s32.totalorder %s17, 0
    %p77 = por %p75, %p76
    %s79 = sadd.s32 %s78, 1
    %p82 = scmp.eq.s32.totalorder %s11, 3
    %p83 = scmp.ne.s32.totalorder %s78, %s80
    %p84 = scmp.eq.s32.totalorder %s11, 0
    %p85 = por %p83, %p84
    %p86 = scmp.ne.s32.totalorder %s78, %s80
    %p87 = scmp.eq.s32.totalorder %s16, 3
    %p88 = por %p86, %p87
    %p89 = scmp.ne.s32.totalorder %s80, %s81
    %p90 = scmp.eq.s32.totalorder %s16, 0
    %p91 = por %p89, %p90
    %p92 = scmp.ne.s32.totalorder %s80, %s81
    %p93 = scmp.eq.s32.totalorder %s17, 3
    %p94 = por %p92, %p93
    %p96 = scmp.ne.s32.totalorder %s81, %s95
    %p97 = scmp.eq.s32.totalorder %s17, 0
    %p98 = por %p96, %p97
    %s100 = sadd.s32 %s99, 1
    %p103 = scmp.eq.s32.totalorder %s11, 3
    %p104 = scmp.ne.s32.totalorder %s99, %s101
    %p105 = scmp.eq.s32.totalorder %s11, 0
    %p106 = por %p104, %p105
    %p107 = scmp.ne.s32.totalorder %s99, %s101
    %p108 = scmp.eq.s32.totalorder %s16, 3
    %p109 = por %p107, %p108
    %p110 = scmp.ne.s32.totalorder %s101, %s102
    %p111 = scmp.eq.s32.totalorder %s16, 0
    %p112 = por %p110, %p111
    %p113 = scmp.ne.s32.totalorder %s101, %s102
    %p114 = scmp.eq.s32.totalorder %s17, 3
    %p115 = por %p113, %p114
    %p117 = scmp.ne.s32.totalorder %s102, %s116
    %p118 = scmp.eq.s32.totalorder %s17, 0
    %p119 = por %p117, %p118
    %s121 = sadd.s32 %s120, 1
    %p124 = scmp.eq.s32.totalorder %s11, 3
    %p125 = scmp.ne.s32.totalorder %s120, %s122
    %p126 = scmp.eq.s32.totalorder %s11, 0
    %p127 = por %p125, %p126
    %p128 = scmp.ne.s32.totalorder %s120, %s122
    %p129 = scmp.eq.s32.totalorder %s16, 3
    %p130 = por %p128, %p129
    %p131 = scmp.ne.s32.totalorder %s122, %s123
    %p132 = scmp.eq.s32.totalorder %s16, 0
    %p133 = por %p131, %p132
    %p134 = scmp.ne.s32.totalorder %s122, %s123
    %p135 = scmp.eq.s32.totalorder %s17, 3
    %p136 = por %p134, %p135
    %p138 = scmp.ne.s32.totalorder %s123, %s137
    %p139 = scmp.eq.s32.totalorder %s17, 0
    %p140 = por %p138, %p139
    %s141 = smul.u32 %s19, %s18
    %s142 = smul.u32 %s26, %s30
    %s143 = ssub.s32 %s141, %s142
    %p144 = scmp.eq.s32.totalorder %s143, 0
    %s146 = sadd.s32 %s145, 1
    %s147 = scalar_select %p144, %s145, %s146
    %p150 = pneg %p144
    %p151 = scmp.eq.s32.totalorder %s11, 3
    %p152 = por %p150, %p151
    %p153 = scmp.ne.s32.totalorder %s145, %s148
    %p154 = scmp.eq.s32.totalorder %s11, 0
    %p155 = por %p153, %p154
    %p156 = scmp.ne.s32.totalorder %s145, %s148
    %p157 = scmp.eq.s32.totalorder %s16, 3
    %p158 = por %p156, %p157
    %p159 = scmp.ne.s32.totalorder %s148, %s149
    %p160 = scmp.eq.s32.totalorder %s16, 0
    %p161 = por %p159, %p160
    %p162 = scmp.ne.s32.totalorder %s148, %s149
    %p163 = scmp.eq.s32.totalorder %s17, 3
    %p164 = por %p162, %p163
    %p166 = scmp.ne.s32.totalorder %s149, %s165
    %p167 = scmp.eq.s32.totalorder %s17, 0
    %p168 = por %p166, %p167
    %p169 = scmp.le.s32.totalorder 1, %s11
    %p170 = scmp.lt.s32.totalorder %s11, 5
    %p171 = pnand %p169, %p170
    %p172 = pneg %p171
    // Predicated region
    $region9: #{tpu_custom_call.1} parent=5 // pred_check
      _
    $region10: #{tpu_custom_call.1} parent=5 // pred_check_branch
      %174 = sbr.rel (%p171) target = $region12
    $region11: #{tpu_custom_call.1} parent=5 // pred_region
      %s175 = ssub.s32 %s11, 1
      // Predicated region
      $region13: #{tpu_custom_call.1} parent=11 // pred_check
        %p176 = pneg %p70
      $region14: #{tpu_custom_call.1} parent=11 // pred_check_branch
        %178 = sbr.rel (%p176) target = $region16
      $region15: #{tpu_custom_call.1} parent=11 // pred_region
        _
      $region16: #{tpu_custom_call.1} parent=11 // pred_fallthru
        _
      // Predicated region
      $region17: #{tpu_custom_call.1} parent=11 // pred_check
        %p179 = pneg %p91
      $region18: #{tpu_custom_call.1} parent=11 // pred_check_branch
        %181 = sbr.rel (%p179) target = $region20
      $region19: #{tpu_custom_call.1} parent=11 // pred_region
        _
      $region20: #{tpu_custom_call.1} parent=11 // pred_fallthru
        _
      // Predicated region
      $region21: #{tpu_custom_call.1} parent=11 // pred_check
        %p182 = pneg %p112
      $region22: #{tpu_custom_call.1} parent=11 // pred_check_branch
        %184 = sbr.rel (%p182) target = $region24
      $region23: #{tpu_custom_call.1} parent=11 // pred_region
        _
      $region24: #{tpu_custom_call.1} parent=11 // pred_fallthru
        _
      // Predicated region
      $region25: #{tpu_custom_call.1} parent=11 // pred_check
        %p185 = pneg %p133
      $region26: #{tpu_custom_call.1} parent=11 // pred_check_branch
        %187 = sbr.rel (%p185) target = $region28
      $region27: #{tpu_custom_call.1} parent=11 // pred_region
        _
      $region28: #{tpu_custom_call.1} parent=11 // pred_fallthru
        _
    $region12: #{tpu_custom_call.1} parent=5 // pred_fallthru
      _
    %p188 = scmp.lt.s32.totalorder %s11, 4
    // Predicated region
    $region29: #{tpu_custom_call.1} parent=5 // pred_check
      %p189 = pneg %p188
    $region30: #{tpu_custom_call.1} parent=5 // pred_check_branch
      %191 = sbr.rel (%p189) target = $region32
    $region31: #{tpu_custom_call.1} parent=5 // pred_region
      // Predicated region
      $region33: #{tpu_custom_call.1} parent=31 // pred_check
        %p192 = pneg %p43
      $region34: #{tpu_custom_call.1} parent=31 // pred_check_branch
        %194 = sbr.rel (%p192) target = $region36
      $region35: #{tpu_custom_call.1} parent=31 // pred_region
        %s195 = smul.u32 4, %s19
        %p196 = scmp.lt.s32.totalorder %s195, 7
        %s197 = scalar_select %p196, %s195, 7
        %s198 = smul.addr %s197, 8
        %s199 = scalar_lea.vmem %s0, %s198
        %s200 = smul.u32 4, %s19
      $region36: #{tpu_custom_call.1} parent=31 // pred_fallthru
        _
    $region32: #{tpu_custom_call.1} parent=5 // pred_fallthru
      _
    %p201 = scmp.le.s32.totalorder 1, %s11
    %p202 = scmp.lt.s32.totalorder %s11, 5
    %p203 = pnand %p201, %p202
    %p204 = pneg %p203
    // Predicated region
    $region37: #{tpu_custom_call.1} parent=5 // pred_check
      _
    $region38: #{tpu_custom_call.1} parent=5 // pred_check_branch
      %206 = sbr.rel (%p203) target = $region40
    $region39: #{tpu_custom_call.1} parent=5 // pred_region
      %s207 = ssub.s32 %s11, 1
      %s208 = smul.u32 4, %s21
      %p209 = scmp.lt.s32.totalorder %s208, 7
      %s210 = scalar_select %p209, %s208, 7
      %s211 = smul.addr %s210, 8
      %s212 = scalar_lea.vmem %s0, %s211
      %p213 = pneg %p49
      %p214 = pneg %p46
      %p215 = pneg %p70
      %p216 = pneg %p67
      %p217 = pneg %p91
      %p218 = pneg %p88
      %p219 = pneg %p112
      %p220 = pneg %p109
      %p221 = pneg %p133
      %p222 = pneg %p130
      %p223 = pneg %p161
      %p224 = pneg %p158
      %s225 = smul.u32 %s21, %s20
      %s226 = smul.u32 4, %s225
      %p227 = scmp.lt.s32.totalorder %s226, 7
      %s228 = scalar_select %p227, %s226, 7
      %s229 = smul.addr %s228, 8
      %s230 = scalar_lea.vmem %s5, %s229
      %s231 = smul.u32 4, %s21
      %p232 = scmp.lt.s32.totalorder %s231, 7
      %s233 = scalar_select %p232, %s231, 7
      %s234 = smul.addr %s233, 8
      %s235 = scalar_lea.vmem %s0, %s234
      %s236 = smul.u32 4, %s21
      %s237 = smul.u32 %s21, %s20
      %s238 = smul.u32 4, %s237
      %p239 = scmp.lt.s32.totalorder %s238, 7
      %s240 = scalar_select %p239, %s238, 7
      %s241 = smul.addr %s240, 8
      %s242 = scalar_lea.vmem %s5, %s241
      %s243 = smul.u32 %s21, %s20
      %s244 = smul.u32 4, %s243
      %p245 = scmp.eq.s32.totalorder %s20, 0
      %p246 = scmp.eq.s32.totalorder %s21, 0
      %p247 = pnand %p245, %p246
      %p248 = pneg %p247
      // Predicated region
      $region41: #{tpu_custom_call.1} parent=39 // pred_check
        _
      $region42: #{tpu_custom_call.1} parent=39 // pred_check_branch
        %250 = sbr.rel (%p247) target = $region44
      $region43: #{tpu_custom_call.1} parent=39 // pred_region
        %vm251 = vcmask 253952
        %252 = vst.msk [vmem:[#allocation2] sm:$0x1] %vm251, 0.0
        %253 = vst.msk [vmem:[#allocation3] sm:$0x1] %vm251, 0.0
      $region44: #{tpu_custom_call.1} parent=39 // pred_fallthru
        _
      // Predicated region
      $region45: #{tpu_custom_call.1} parent=39 // pred_check
        %p254 = pneg %p245
      $region46: #{tpu_custom_call.1} parent=39 // pred_check_branch
        %256 = sbr.rel (%p254) target = $region48
      $region47: #{tpu_custom_call.1} parent=39 // pred_region
        %v257 = vld [vmem:[%s235] sm:$0xff]
        %v258 = vld [vmem:[%s235 + $0x8] sm:$0xff]
        %v259 = vld [vmem:[%s235 + $0x10] sm:$0xff]
        %v260 = vld [vmem:[%s235 + $0x18] sm:$0xff]
        %v261 = vld [vmem:[#allocation2] sm:$0x1]
        %vm262 = vcmask 261120
        %v263 = vsel %vm262, %v257, 0.0
        %v264 = vsel %vm262, %v258, 0.0
        %v265 = vadd.f32 %v263, %v264
        %v266 = vsel %vm262, %v259, 0.0
        %v267 = vadd.f32 %v265, %v266
        %v268 = vsel %vm262, %v260, 0.0
        %v269 = vadd.f32 %v267, %v268
        %v270 = vrot.slane %v269, 4
        %v271 = vadd.f32 %v269, %v270
        %v272 = vrot.slane %v271, 2
        %v273 = vadd.f32 %v271, %v272
        %v274 = vrot.slane %v273, 1
        %v275 = vadd.f32 %v273, %v274
        %v276 = vadd.f32 %v261, %v275
        %vm277 = vcmask 253952
        %278 = vst.msk [vmem:[#allocation2] sm:$0x1] %vm277, %v276
        %v279 = vld [vmem:[#allocation3] sm:$0x1]
        %v280 = vmul.f32 %v257, %v257
        %v281 = vmul.f32 %v258, %v258
        %v282 = vmul.f32 %v259, %v259
        %v283 = vmul.f32 %v260, %v260
        %v284 = vsel %vm262, %v280, 0.0
        %v285 = vsel %vm262, %v281, 0.0
        %v286 = vadd.f32 %v284, %v285
        %v287 = vsel %vm262, %v282, 0.0
        %v288 = vadd.f32 %v286, %v287
        %v289 = vsel %vm262, %v283, 0.0
        %v290 = vadd.f32 %v288, %v289
        %v291 = vrot.slane %v290, 4
        %v292 = vadd.f32 %v290, %v291
        %v293 = vrot.slane %v292, 2
        %v294 = vadd.f32 %v292, %v293
        %v295 = vrot.slane %v294, 1
        %v296 = vadd.f32 %v294, %v295
        %v297 = vadd.f32 %v279, %v296
        %298 = vst.msk [vmem:[#allocation3] sm:$0x1] %vm277, %v297
      $region48: #{tpu_custom_call.1} parent=39 // pred_fallthru
        _
      %p299 = scmp.eq.s32.totalorder %s21, 1
      %p300 = pnand %p245, %p299
      %p301 = pneg %p300
      // Predicated region
      $region49: #{tpu_custom_call.1} parent=39 // pred_check
        _
      $region50: #{tpu_custom_call.1} parent=39 // pred_check_branch
        %303 = sbr.rel (%p300) target = $region52
      $region51: #{tpu_custom_call.1} parent=39 // pred_region
        %v304 = vld [vmem:[#allocation2] sm:$0x1]
        %v305 = vmul.f32 %v304, 0.015625
        %v306 = vld [vmem:[#allocation3] sm:$0x1]
        %v307 = vmul.f32 %v306, 0.015625
        %v308 = vmul.f32 %v305, %v305
        %v309 = vsub.f32 %v307, %v308
        %v310 = vmax.f32 %v309, 0.0
        %v311 = vld [vmem:[%s1] sm:$0x1]
        %v312 = vadd.f32 %v310, 1e-05
        %v313 = vrsqrt.pop %v312
        %v314 = vmul.f32 %v313, %v312
        %v315 = vmul.f32 %v314, %v313
        %v316 = vmul.f32 0.5, %v315
        %v317 = vsub.f32 1.5, %v316
        %v318 = vmul.f32 %v313, %v317
        %vm319 = vweird.f32 %v312
        %vm320 = vweird.f32 %v313
        %vm321 = vmor %vm319, %vm320
        %v322 = vsel %vm321, %v313, %v318
        %v323 = vmul.f32 %v311, %v322
        %v324 = vld [vmem:[%s2] sm:$0x1]
        %v325 = vmul.f32 %v305, %v323
        %v326 = vsub.f32 %v324, %v325
        %v327 = vld [vmem:[%s3] sm:$0xff]
        %v328 = vld [vmem:[%s3 + $0x8] sm:$0xff]
        %v329 = vld [vmem:[%s3 + $0x10] sm:$0xff]
        %v330 = vld [vmem:[%s3 + $0x18] sm:$0xff]
        %v331 = vlaneseq
        %v332 = vshrl.u32 %v331, 7
        %v333 = vadd.s32 %v332, 8
        %v334 = vadd.s32 %v332, 16
        %v335 = vadd.s32 %v332, 24
        %v336 = vlaneseq
        %v337 = vand.u32 %v336, 127
        %vm338 = vcmp.eq.s32.totalorder %v332, %v337
        %vm339 = vcmp.eq.s32.totalorder %v333, %v337
        %vm340 = vcmp.eq.s32.totalorder %v334, %v337
        %vm341 = vcmp.eq.s32.totalorder %v335, %v337
        %v343 = vperm.slane %v323, 0
        %v345 = vsel %vm338, %v343, 0.0
        %v346 = vsel %vm339, %v343, 0.0
        %v347 = vsel %vm340, %v343, 0.0
        %v348 = vsel %vm341, %v343, 0.0
        %vm349 = vcmask 261120
        %v351 = vsel %vm349, %v345, 0
        %v354 = vsel %vm349, %v346, 0
        %v357 = vsel %vm349, %v347, 0
        %v360 = vsel %vm349, %v348, 0
        %362 = vmatpush.msra.mxu0 0.0
        %363 = vmatpush.msra.mxu0 0.0
        %364 = vmatpush.msra.mxu0 0.0
        %365 = vmatpush.msra.mxu0 0.0
        %366 = vmatpush.msra.mxu0 0.0
        %367 = vmatpush.msra.mxu0 0.0
        %368 = vmatpush.msra.mxu0 0.0
        %369 = vmatpush.msra.mxu0 0.0
        %370 = vmatpush.msra.mxu0 0.0
        %371 = vmatpush.msra.mxu0 0.0
        %372 = vmatpush.msra.mxu0 0.0
        %373 = vmatpush.msra.mxu0 0.0
        %374 = vmatpush.msra.mxu0 %v330
        %375 = vmatpush.msra.mxu0 %v329
        %376 = vmatpush.msra.mxu0 %v328
        %377 = vmatpush.msra.mxu0 %v327
        %378 = vmatmul.f32.gmra.mxu0 %v351
        %v379 = vpop.f32.mrf.mxu0
        %v380 = vadd.f32 0.0, %v379
        %381 = vmatmul.f32.gmra.mxu0 %v354
        %v382 = vpop.f32.mrf.mxu0
        %v383 = vadd.f32 0.0, %v382
        %384 = vmatmul.f32.gmra.mxu0 %v357
        %v385 = vpop.f32.mrf.mxu0
        %v386 = vadd.f32 0.0, %v385
        %387 = vmatmul.f32.gmra.mxu0 %v360
        %v388 = vpop.f32.mrf.mxu0
        %v389 = vadd.f32 0.0, %v388
        %390 = vdwg.mxu0
        %vm391 = vcmask 130048
        %392 = vst.msk [vmem:[#allocation4] sm:$0xff] %vm391, %v380
        %393 = vst.msk [vmem:[#allocation4 + $0x8] sm:$0xff] %vm391, %v383
        %394 = vst.msk [vmem:[#allocation4 + $0x10] sm:$0xff] %vm391, %v386
        %395 = vst.msk [vmem:[#allocation4 + $0x18] sm:$0xff] %vm391, %v389
        %v396 = vld [vmem:[%s4] sm:$0x1]
        %v398 = vsel %vm349, %v326, 0
        %400 = vmatpush.msra.mxu0 0.0
        %401 = vmatpush.msra.mxu0 0.0
        %402 = vmatpush.msra.mxu0 0.0
        %403 = vmatpush.msra.mxu0 0.0
        %404 = vmatpush.msra.mxu0 0.0
        %405 = vmatpush.msra.mxu0 0.0
        %406 = vmatpush.msra.mxu0 0.0
        %407 = vmatpush.msra.mxu0 0.0
        %408 = vmatpush.msra.mxu0 0.0
        %409 = vmatpush.msra.mxu0 0.0
        %410 = vmatpush.msra.mxu0 0.0
        %411 = vmatpush.msra.mxu0 0.0
        %412 = vmatpush.msra.mxu0 %v330
        %413 = vmatpush.msra.mxu0 %v329
        %414 = vmatpush.msra.mxu0 %v328
        %415 = vmatpush.msra.mxu0 %v327
        %416 = vmatmul.f32.gmra.mxu0 %v398
        %v417 = vpop.f32.mrf.mxu0
        %v418 = vadd.f32 %v396, %v417
        %419 = vdwg.mxu0
        %vm420 = vcmask 122880
        %421 = vst.msk [vmem:[#allocation5] sm:$0x1] %vm420, %v418
      $region52: #{tpu_custom_call.1} parent=39 // pred_fallthru
        _
      %p422 = scmp.eq.s32.totalorder %s20, 1
      // Predicated region
      $region53: #{tpu_custom_call.1} parent=39 // pred_check
        %p423 = pneg %p422
      $region54: #{tpu_custom_call.1} parent=39 // pred_check_branch
        %425 = sbr.rel (%p423) target = $region56
      $region55: #{tpu_custom_call.1} parent=39 // pred_region
        %v426 = vld [vmem:[%s235] sm:$0xff]
        %v427 = vld [vmem:[%s235 + $0x8] sm:$0xff]
        %v428 = vld [vmem:[%s235 + $0x10] sm:$0xff]
        %v429 = vld [vmem:[%s235 + $0x18] sm:$0xff]
        %v430 = vld [vmem:[#allocation4] sm:$0xff]
        %v431 = vld [vmem:[#allocation4 + $0x8] sm:$0xff]
        %v432 = vld [vmem:[#allocation4 + $0x10] sm:$0xff]
        %v433 = vld [vmem:[#allocation4 + $0x18] sm:$0xff]
        %v434 = vld [vmem:[#allocation5] sm:$0x1]
        %v436 = vperm.slane %v434, 0
        %vm438 = vcmask 261120
        %v440 = vsel %vm438, %v426, 0
        %v443 = vsel %vm438, %v427, 0
        %v446 = vsel %vm438, %v428, 0
        %v449 = vsel %vm438, %v429, 0
        %451 = vmatpush.msra.mxu0 0.0
        %452 = vmatpush.msra.mxu0 0.0
        %453 = vmatpush.msra.mxu0 0.0
        %454 = vmatpush.msra.mxu0 0.0
        %455 = vmatpush.msra.mxu0 0.0
        %456 = vmatpush.msra.mxu0 0.0
        %457 = vmatpush.msra.mxu0 0.0
        %458 = vmatpush.msra.mxu0 0.0
        %459 = vmatpush.msra.mxu0 0.0
        %460 = vmatpush.msra.mxu0 0.0
        %461 = vmatpush.msra.mxu0 0.0
        %462 = vmatpush.msra.mxu0 0.0
        %463 = vmatpush.msra.mxu0 %v433
        %464 = vmatpush.msra.mxu0 %v432
        %465 = vmatpush.msra.mxu0 %v431
        %466 = vmatpush.msra.mxu0 %v430
        %467 = vmatmul.f32.gmra.mxu0 %v440
        %v468 = vpop.f32.mrf.mxu0
        %v469 = vadd.f32 %v436, %v468
        %470 = vmatmul.f32.gmra.mxu0 %v443
        %v471 = vpop.f32.mrf.mxu0
        %v472 = vadd.f32 %v436, %v471
        %473 = vmatmul.f32.gmra.mxu0 %v446
        %v474 = vpop.f32.mrf.mxu0
        %v475 = vadd.f32 %v436, %v474
        %476 = vmatmul.f32.gmra.mxu0 %v449
        %v477 = vpop.f32.mrf.mxu0
        %v478 = vadd.f32 %v436, %v477
        %479 = vdwg.mxu0
        %v480 = vmax.f32 %v469, 0.0
        %v481 = vmax.f32 %v472, 0.0
        %v482 = vmax.f32 %v475, 0.0
        %v483 = vmax.f32 %v478, 0.0
        %vm484 = vcmask 130048
        %485 = vst.msk [vmem:[%s242] sm:$0xff] %vm484, %v480
        %486 = vst.msk [vmem:[%s242 + $0x8] sm:$0xff] %vm484, %v481
        %487 = vst.msk [vmem:[%s242 + $0x10] sm:$0xff] %vm484, %v482
        %488 = vst.msk [vmem:[%s242 + $0x18] sm:$0xff] %vm484, %v483
      $region56: #{tpu_custom_call.1} parent=39 // pred_fallthru
        _
      %s489 = smul.u32 %s21, %s20
      %s490 = smul.u32 4, %s489
      %p491 = scmp.lt.s32.totalorder %s490, 7
      %s492 = scalar_select %p491, %s490, 7
      %s493 = smul.addr %s492, 8
      %s494 = scalar_lea.vmem %s5, %s493
      // Predicated region
      $region57: #{tpu_custom_call.1} parent=39 // pred_check
        %p495 = pneg %p158
      $region58: #{tpu_custom_call.1} parent=39 // pred_check_branch
        %497 = sbr.rel (%p495) target = $region60
      $region59: #{tpu_custom_call.1} parent=39 // pred_region
        %s498 = smul.u32 %s21, %s20
        %s499 = smul.u32 4, %s498
      $region60: #{tpu_custom_call.1} parent=39 // pred_fallthru
        _
    $region40: #{tpu_custom_call.1} parent=5 // pred_fallthru
      _
    %p500 = scmp.le.s32.totalorder 2, %s11
    // Predicated region
    $region61: #{tpu_custom_call.1} parent=5 // pred_check
      %p501 = pneg %p500
    $region62: #{tpu_custom_call.1} parent=5 // pred_check_branch
      %503 = sbr.rel (%p501) target = $region64
    $region63: #{tpu_custom_call.1} parent=5 // pred_region
      %s504 = ssub.s32 %s11, 2
      // Predicated region
      $region65: #{tpu_custom_call.1} parent=63 // pred_check
        %p505 = pneg %p164
      $region66: #{tpu_custom_call.1} parent=63 // pred_check_branch
        %507 = sbr.rel (%p505) target = $region68
      $region67: #{tpu_custom_call.1} parent=63 // pred_region
        %s508 = smul.u32 %s23, %s22
        %s509 = smul.u32 4, %s508
        %p510 = scmp.lt.s32.totalorder %s509, 7
        %s511 = scalar_select %p510, %s509, 7
        %s512 = smul.addr %s511, 8
        %s513 = scalar_lea.vmem %s5, %s512
      $region68: #{tpu_custom_call.1} parent=63 // pred_fallthru
        _
    $region64: #{tpu_custom_call.1} parent=5 // pred_fallthru
      _
  $region6: #{tpu_custom_call.1} parent=0 // loop_footer
    %s15 = sadd.s32 1, %s11
  $region7: #{tpu_custom_call.1} parent=0 // loop_footer_branch
    %10 = sbr.rel target = $region3
  $region8: #{tpu_custom_call.1} parent=0 // loop_exit
    _

</llo_original>
